<compile_context>
chip_gen: v6e
topology: v6e:2x2x1
jax: 0.10.0
libtpu: 0.0.40
codegen_flags: <defaults>
</compile_context>

<pallas_src>
import jax
import jax.numpy as jnp
from jax.experimental import pallas as pl
from jax.experimental.pallas import tpu as pltpu


# Total VMEM block budget (bytes), including the default 2-deep pipeline
# buffers for the input block and all three output blocks.  Safely under the
# smallest default scoped-VMEM limit (v5e: 16 MiB).
_VMEM_BLOCK_BUDGET = 8 * 1024 * 1024

# Below this total input size, XLA slices beat pallas_call fixed overhead.
_SMALL_INPUT_BYTES = 1 << 20


def _split_kernel_rows(x_ref, s0_ref, s1_ref, s2_ref):
    # x_ref block: (N, 3, t, 128); outputs: (N, t, 128).  Full (8,128) tiles,
    # one unmasked lane/sublane-dense store per output.
    s0_ref[...] = x_ref[:, 0, :, :]
    s1_ref[...] = x_ref[:, 1, :, :]
    s2_ref[...] = x_ref[:, 2, :, :]


def _split_kernel_lanes(x_ref, s0_ref, s1_ref, s2_ref):
    # Fallback layout: x_ref block (N, 3, t_hw); outputs (N, t_hw).
    s0_ref[...] = x_ref[:, 0, :]
    s1_ref[...] = x_ref[:, 1, :]
    s2_ref[...] = x_ref[:, 2, :]


def _choose_tile(extent, bytes_per_unit, align, budget=_VMEM_BLOCK_BUDGET):
    """Pick the block extent along the tiled axis.

    bytes_per_unit: VMEM bytes consumed per unit of the tiled axis, summed
    over the input block and 3 output blocks, including 2-deep buffering.
    Returns either the full `extent` or a multiple of `align` (8 for the
    sublane-row axis, 128 for the lane axis).
    """
    t = max(1, budget // bytes_per_unit)
    if t >= extent:
        # Whole axis fits in one block.  If there is enough work, keep >= 2
        # grid steps so "parallel" can shard across v7x's two TensorCores
        # (no-op on single-TC v5e/v6e).
        if extent >= 2 * align:
            half = -(-extent // 2)                  # ceil(extent / 2)
            half = -(-half // align) * align        # round up to `align`
            if half < extent:
                return half
        return extent
    t = max(align, (t // align) * align)
    return min(t, extent)


def _pallas_split(v1):
    """Returns the three (N,1,H,W) channel splits of v1 via a Pallas copy."""
    N, C, H, W = v1.shape
    HW = H * W
    itemsize = jnp.dtype(v1.dtype).itemsize

    if HW % 128 == 0:
        # Sublane-packed layout: rows of 128 lanes, tiled in multiples of 8.
        R = HW // 128
        x_in = v1.reshape(N, C, R, 128)
        bytes_per_row = 2 * (C + 3) * N * 128 * itemsize
        t = _choose_tile(R, bytes_per_row, 8)
        grid = (pl.cdiv(R, t),)
        in_spec = pl.BlockSpec((N, C, t, 128), lambda i: (0, 0, i, 0))
        out_spec = pl.BlockSpec((N, t, 128), lambda i: (0, i, 0))
        out_shape = jax.ShapeDtypeStruct((N, R, 128), v1.dtype)
        kernel = _split_kernel_rows
    else:
        # Lane-dense fallback when HW is not a multiple of 128.
        x_in = v1.reshape(N, C, HW)
        bytes_per_col = 2 * (C + 3) * N * itemsize
        t = _choose_tile(HW, bytes_per_col, 128)
        grid = (pl.cdiv(HW, t),)
        in_spec = pl.BlockSpec((N, C, t), lambda i: (0, 0, i))
        out_spec = pl.BlockSpec((N, t), lambda i: (0, i))
        out_shape = jax.ShapeDtypeStruct((N, HW), v1.dtype)
        kernel = _split_kernel_lanes

    s0, s1, s2 = pl.pallas_call(
        kernel,
        out_shape=(out_shape, out_shape, out_shape),
        grid=grid,
        in_specs=[in_spec],
        out_specs=(out_spec, out_spec, out_spec),
        compiler_params=pltpu.CompilerParams(
            dimension_semantics=("parallel",)
        ),
    )(x_in)

    return tuple(s.reshape(N, 1, H, W) for s in (s0, s1, s2))


def model_forward(v1, *, force_pallas=False):
    """Returns (concatenated_tensor, (split0, split1, split2))."""
    N, C, H, W = v1.shape
    assert C == 3, "torch.split(v1, [1,1,1], dim=1) requires 3 channels"

    nbytes = v1.size * jnp.dtype(v1.dtype).itemsize
    if force_pallas or nbytes >= _SMALL_INPUT_BYTES:
        splits = _pallas_split(v1)
    else:
        # Tiny-input bypass: XLA slices are already at roofline here and the
        # fixed pallas_call cost would dominate.
        splits = tuple(v1[:, c:c + 1] for c in range(3))

    # cat(split(v1, [1,1,1], dim=1), dim=1) == v1 exactly: no HBM write.
    concatenated = v1
    return concatenated, splits


# Deterministic (unused) parameter initialization mirroring Model.__init__:
# 10x Conv2d(8,8,1), 10x BatchNorm2d(8), 10x BatchNorm2d(8), 10x Conv2d(8,8,3).
# They are never used in forward(); built only to respect the module spec.
def init_params(key):
    params = {}
    k = key
    for i in range(10):
        k, k1, k2 = jax.random.split(k, 3)
        params[f"layer1_{i}_w"] = jax.random.normal(k1, (8, 8, 1, 1), jnp.float32) * 0.1
        params[f"layer1_{i}_b"] = jnp.zeros((8,), jnp.float32)
        params[f"layer2_{i}_gamma"] = jnp.ones((8,), jnp.float32)
        params[f"layer2_{i}_beta"] = jnp.zeros((8,), jnp.float32)
        params[f"layer3_{i}_gamma"] = jnp.ones((8,), jnp.float32)
        params[f"layer3_{i}_beta"] = jnp.zeros((8,), jnp.float32)
        params[f"layer4_{i}_w"] = jax.random.normal(k2, (8, 8, 3, 3), jnp.float32) * 0.1
        params[f"layer4_{i}_b"] = jnp.zeros((8,), jnp.float32)
    return params


if __name__ == "__main__":
    key = jax.random.PRNGKey(0)
    k1, k2, kp = jax.random.split(key, 3)
    _params = init_params(kp)  # unused by forward, constructed for fidelity

    fwd = jax.jit(model_forward, static_argnames=("force_pallas",))

    # (1) Small test shape, Pallas kernel forced (HW=256 -> sublane-packed path).
    v1 = jax.random.normal(k1, (2, 3, 16, 16), dtype=jnp.float32)
    cat, splits = fwd(v1, force_pallas=True)
    jax.block_until_ready((cat, splits))
    assert cat.shape == (2, 3, 16, 16)
    assert all(s.shape == (2, 1, 16, 16) for s in splits)
    assert jnp.allclose(cat, v1)
    for c in range(3):
        assert jnp.allclose(splits[c], v1[:, c:c + 1])

    # (2) HW not a multiple of 128 -> lane-dense fallback Pallas path.
    v1b = jax.random.normal(k2, (2, 3, 10, 12), dtype=jnp.float32)
    catb, splitsb = fwd(v1b, force_pallas=True)
    jax.block_until_ready((catb, splitsb))
    assert jnp.allclose(catb, v1b)
    for c in range(3):
        assert jnp.allclose(splitsb[c], v1b[:, c:c + 1])

    # (3) Default path: tiny input takes the XLA-slice bypass.
    catc, splitsc = fwd(v1)
    jax.block_until_ready((catc, splitsc))
    assert jnp.allclose(catc, v1)
    for c in range(3):
        assert jnp.allclose(splitsc[c], v1[:, c:c + 1])

    print("KERNEL_OK")
</pallas_src>

<mosaic_0001>
module attributes {stable_mosaic.version = 11 : i64} {
  func.func @_split_kernel_rows(%arg0: i32, %arg1: memref<2x3x2x128xf32, #tpu.memory_space<vmem>>, %arg2: memref<2x2x128xf32, #tpu.memory_space<vmem>>, %arg3: memref<2x2x128xf32, #tpu.memory_space<vmem>>, %arg4: memref<2x2x128xf32, #tpu.memory_space<vmem>>) attributes {dimension_semantics = [#tpu.dimension_semantics<parallel>], iteration_bounds = array<i64: 1>, scalar_prefetch = 0 : i64, scratch_operands = 0 : i64, tpu.core_type = #tpu.core_type<tc>, window_params = [{transform_indices = @transform_0, window_bounds = array<i64: 2, 3, 2, 128>}, {transform_indices = @transform_1, window_bounds = array<i64: 2, 2, 128>}, {transform_indices = @transform_2, window_bounds = array<i64: 2, 2, 128>}, {transform_indices = @transform_3, window_bounds = array<i64: 2, 2, 128>}]} {
    %c0 = arith.constant 0 : index
    %c0_0 = arith.constant 0 : index
    %c0_1 = arith.constant 0 : index
    %c0_2 = arith.constant 0 : index
    %0 = vector.load %arg1[%c0, %c0_0, %c0_1, %c0_2] : memref<2x3x2x128xf32, #tpu.memory_space<vmem>>, vector<2x1x2x128xf32>
    %1 = vector.shape_cast %0 : vector<2x1x2x128xf32> to vector<2x2x128xf32>
    %c0_3 = arith.constant 0 : index
    %c0_4 = arith.constant 0 : index
    %c0_5 = arith.constant 0 : index
    %2 = vector.load %arg2[%c0_3, %c0_4, %c0_5] : memref<2x2x128xf32, #tpu.memory_space<vmem>>, vector<2x2x128xf32>
    tpu.vector_store %arg2[%c0_3, %c0_4, %c0_5], %1 {strides = array<i32>} : memref<2x2x128xf32, #tpu.memory_space<vmem>>, vector<2x2x128xf32>,
    %c0_6 = arith.constant 0 : index
    %c1 = arith.constant 1 : index
    %c0_7 = arith.constant 0 : index
    %c0_8 = arith.constant 0 : index
    %3 = vector.load %arg1[%c0_6, %c1, %c0_7, %c0_8] : memref<2x3x2x128xf32, #tpu.memory_space<vmem>>, vector<2x1x2x128xf32>
    %4 = vector.shape_cast %3 : vector<2x1x2x128xf32> to vector<2x2x128xf32>
    %c0_9 = arith.constant 0 : index
    %c0_10 = arith.constant 0 : index
    %c0_11 = arith.constant 0 : index
    %5 = vector.load %arg3[%c0_9, %c0_10, %c0_11] : memref<2x2x128xf32, #tpu.memory_space<vmem>>, vector<2x2x128xf32>
    tpu.vector_store %arg3[%c0_9, %c0_10, %c0_11], %4 {strides = array<i32>} : memref<2x2x128xf32, #tpu.memory_space<vmem>>, vector<2x2x128xf32>,
    %c0_12 = arith.constant 0 : index
    %c2 = arith.constant 2 : index
    %c0_13 = arith.constant 0 : index
    %c0_14 = arith.constant 0 : index
    %6 = vector.load %arg1[%c0_12, %c2, %c0_13, %c0_14] : memref<2x3x2x128xf32, #tpu.memory_space<vmem>>, vector<2x1x2x128xf32>
    %7 = vector.shape_cast %6 : vector<2x1x2x128xf32> to vector<2x2x128xf32>
    %c0_15 = arith.constant 0 : index
    %c0_16 = arith.constant 0 : index
    %c0_17 = arith.constant 0 : index
    %8 = vector.load %arg4[%c0_15, %c0_16, %c0_17] : memref<2x2x128xf32, #tpu.memory_space<vmem>>, vector<2x2x128xf32>
    tpu.vector_store %arg4[%c0_15, %c0_16, %c0_17], %7 {strides = array<i32>} : memref<2x2x128xf32, #tpu.memory_space<vmem>>, vector<2x2x128xf32>,
    return
  }
  func.func @transform_0(%arg0: i32) -> (i32, i32, i32, i32) {
    %c0_i32 = arith.constant 0 : i32
    %c0_i32_0 = arith.constant 0 : i32
    %c0_i32_1 = arith.constant 0 : i32
    %c0_i32_2 = arith.constant 0 : i32
    return %c0_i32, %c0_i32_0, %arg0, %c0_i32_1 : i32, i32, i32, i32
  }
  func.func @transform_1(%arg0: i32) -> (i32, i32, i32) {
    %c0_i32 = arith.constant 0 : i32
    %c0_i32_0 = arith.constant 0 : i32
    %c0_i32_1 = arith.constant 0 : i32
    return %c0_i32, %arg0, %c0_i32_0 : i32, i32, i32
  }
  func.func @transform_2(%arg0: i32) -> (i32, i32, i32) {
    %c0_i32 = arith.constant 0 : i32
    %c0_i32_0 = arith.constant 0 : i32
    %c0_i32_1 = arith.constant 0 : i32
    return %c0_i32, %arg0, %c0_i32_0 : i32, i32, i32
  }
  func.func @transform_3(%arg0: i32) -> (i32, i32, i32) {
    %c0_i32 = arith.constant 0 : i32
    %c0_i32_0 = arith.constant 0 : i32
    %c0_i32_1 = arith.constant 0 : i32
    return %c0_i32, %arg0, %c0_i32_0 : i32, i32, i32
  }
}

</mosaic_0001>

<llo_original>
// kernel: model_forward.1
$region0: #{model_forward.1}
  #allocation0 [shape = 'u32[]', space=smem, size = 0x4, offset = 0x4, fixed_abs, tag = 'smem constant byte address 0x4 - core index']
  #allocation1 [shape = 'u32[144,128]{1,0:T(1,128)}', space=vmem, size = 0x12000, scoped, tag = 'internal scratch']
  %s0 = inlined_call_operand.vmem [shape: f32[2,3,2,128], index: 0, kind: input, shape index: {}]
  %s1 = inlined_call_operand.vmem [shape: f32[2,2,128], index: 1, kind: output, shape index: {0}]
  %s2 = inlined_call_operand.vmem [shape: f32[2,2,128], index: 2, kind: output, shape index: {1}]
  %s3 = inlined_call_operand.vmem [shape: f32[2,2,128], index: 3, kind: output, shape index: {2}]
  %4 = xla_tuple %s1, %s2, %s3
  %s5 = sld [smem:[#allocation0]]
  $region30: #{model_forward.1} parent=0
    _
  %s7 = ssub.s32 1, %s5
  %s8 = scalar_select 0, %s7, %s5
  // Predicated region
  $region2: #{model_forward.1} parent=0 // pred_check
    _
  $region3: #{model_forward.1} parent=0 // pred_check_branch
    %10 = sbr.rel (0) target = $region5
  $region4: #{model_forward.1} parent=0 // pred_region
    _
  $region5: #{model_forward.1} parent=0 // pred_fallthru
    _
  %v11 = vld [vmem:[%s0] sm:$0x3]
  %v12 = vld [vmem:[%s0 + $0x6] sm:$0x3]
  %13 = vst [vmem:[%s1] sm:$0x3] %v11
  %14 = vst [vmem:[%s1 + $0x2] sm:$0x3] %v12
  %s15 = scalar_lea.vmem %s0, 2
  %v16 = vld [vmem:[%s15] sm:$0x3]
  %v17 = vld [vmem:[%s15 + $0x6] sm:$0x3]
  %18 = vst [vmem:[%s2] sm:$0x3] %v16
  %19 = vst [vmem:[%s2 + $0x2] sm:$0x3] %v17
  %s20 = scalar_lea.vmem %s0, 4
  %v21 = vld [vmem:[%s20] sm:$0x3]
  %v22 = vld [vmem:[%s20 + $0x6] sm:$0x3]
  %23 = vst [vmem:[%s3] sm:$0x3] %v21
  %24 = vst [vmem:[%s3 + $0x2] sm:$0x3] %v22
  // Predicated region
  $region6: #{model_forward.1} parent=0 // pred_check
    _
  $region7: #{model_forward.1} parent=0 // pred_check_branch
    %26 = sbr.rel (0) target = $region9
  $region8: #{model_forward.1} parent=0 // pred_region
    _
  $region9: #{model_forward.1} parent=0 // pred_fallthru
    _
  // Predicated region
  $region10: #{model_forward.1} parent=0 // pred_check
    _
  $region11: #{model_forward.1} parent=0 // pred_check_branch
    %28 = sbr.rel (0) target = $region13
  $region12: #{model_forward.1} parent=0 // pred_region
    _
  $region13: #{model_forward.1} parent=0 // pred_fallthru
    _
  // Predicated region
  $region14: #{model_forward.1} parent=0 // pred_check
    _
  $region15: #{model_forward.1} parent=0 // pred_check_branch
    %30 = sbr.rel (0) target = $region17
  $region16: #{model_forward.1} parent=0 // pred_region
    _
  $region17: #{model_forward.1} parent=0 // pred_fallthru
    _
  // Predicated region
  $region18: #{model_forward.1} parent=0 // pred_check
    _
  $region19: #{model_forward.1} parent=0 // pred_check_branch
    %32 = sbr.rel (0) target = $region21
  $region20: #{model_forward.1} parent=0 // pred_region
    _
  $region21: #{model_forward.1} parent=0 // pred_fallthru
    _
  // Predicated region
  $region22: #{model_forward.1} parent=0 // pred_check
    _
  $region23: #{model_forward.1} parent=0 // pred_check_branch
    %34 = sbr.rel (0) target = $region25
  $region24: #{model_forward.1} parent=0 // pred_region
    _
  $region25: #{model_forward.1} parent=0 // pred_fallthru
    _
  // Predicated region
  $region26: #{model_forward.1} parent=0 // pred_check
    _
  $region27: #{model_forward.1} parent=0 // pred_check_branch
    %36 = sbr.rel (0) target = $region29
  $region28: #{model_forward.1} parent=0 // pred_region
    _
  $region29: #{model_forward.1} parent=0 // pred_fallthru
    _

</llo_original>
